<compile_context>
chip_gen: v7x
topology: tpu7x:2x2x1
jax: 0.10.0
libtpu: 0.0.40
codegen_flags: <defaults>
</compile_context>

<pallas_src>
import jax
import jax.numpy as jnp
from jax.experimental import pallas as pl
from jax.experimental.pallas import tpu as pltpu

_EPS = 1e-5


def _bn_relu_cmajor_kernel(x_ref, gb_ref, o_ref):
    """C-major layout: x_ref (C, L) f32, gb_ref (C, 2) = [gamma | beta]."""
    x = x_ref[...]                                   # (C, L), already f32
    inv_n = 1.0 / x.shape[1]

    # Single-pass per-channel batch stats: one traversal of x, two lane (XLU)
    # reductions, no (C, L) diff temporary.
    s1 = jnp.sum(x, axis=1, keepdims=True)           # (C, 1)
    s2 = jnp.sum(x * x, axis=1, keepdims=True)       # (C, 1)
    mean = s1 * inv_n
    var = jnp.maximum(s2 * inv_n - mean * mean, 0.0)  # clamp E[x^2]-mean^2 form
    inv_std = jax.lax.rsqrt(var + _EPS)

    # Fold affine into one per-channel scale/shift -> single FMA per element.
    scale = inv_std * gb_ref[:, 0:1]                  # (C, 1)
    shift = gb_ref[:, 1:2] - mean * scale             # (C, 1)

    o_ref[...] = jnp.maximum(x * scale + shift, 0.0).astype(o_ref.dtype)


def _bn_relu_lanedense_kernel(x_ref, gb_ref, o_ref):
    """Lane-dense layout: x_ref (L, C) f32, gb_ref (2, C) = [gamma ; beta]."""
    x = x_ref[...]                                   # (L, C)
    inv_n = 1.0 / x.shape[0]

    s1 = jnp.sum(x, axis=0, keepdims=True)            # (1, C)
    s2 = jnp.sum(x * x, axis=0, keepdims=True)        # (1, C)
    mean = s1 * inv_n
    var = jnp.maximum(s2 * inv_n - mean * mean, 0.0)
    inv_std = jax.lax.rsqrt(var + _EPS)

    scale = inv_std * gb_ref[0:1, :]                   # (1, C)
    shift = gb_ref[1:2, :] - mean * scale              # (1, C)

    o_ref[...] = jnp.maximum(x * scale + shift, 0.0).astype(o_ref.dtype)


def _call_bn_relu(kernel, x2d, gb):
    return pl.pallas_call(
        kernel,
        out_shape=jax.ShapeDtypeStruct(x2d.shape, x2d.dtype),
        in_specs=[
            pl.BlockSpec(memory_space=pltpu.VMEM),
            pl.BlockSpec(memory_space=pltpu.VMEM),
        ],
        out_specs=pl.BlockSpec(memory_space=pltpu.VMEM),
    )(x2d, gb)


def batchnorm_relu_nhwc(x_nhwc, gamma, beta):
    """Preferred entry point: (N, H, W, C) -> (N, H, W, C). Pure reshapes only."""
    N, H, W, C = x_nhwc.shape
    L = N * H * W
    x_lc = x_nhwc.reshape(L, C).astype(jnp.float32)
    gb = jnp.stack([gamma, beta], axis=0).astype(jnp.float32)        # (2, C)
    out = _call_bn_relu(_bn_relu_lanedense_kernel, x_lc, gb)
    return out.reshape(N, H, W, C).astype(x_nhwc.dtype)


def batchnorm_relu(x_nchw, gamma, beta):
    """PyTorch-layout entry point: (N, C, H, W) -> (N, C, H, W).

    For N == 1 (this module's shape) the NCHW <-> (C, L) conversion is a pure
    reshape, so the whole BN+ReLU is a single device op.  For N > 1, fall back
    to the NHWC path via explicit transposes (correctness fallback only).
    """
    N, C, H, W = x_nchw.shape
    if N == 1:
        x_cl = x_nchw.reshape(C, H * W).astype(jnp.float32)          # pure reshape
        gb = jnp.stack([gamma, beta], axis=1).astype(jnp.float32)    # (C, 2)
        out = _call_bn_relu(_bn_relu_cmajor_kernel, x_cl, gb)
        return out.reshape(N, C, H, W).astype(x_nchw.dtype)
    x_nhwc = jnp.transpose(x_nchw, (0, 2, 3, 1))
    out_nhwc = batchnorm_relu_nhwc(x_nhwc, gamma, beta)
    return jnp.transpose(out_nhwc, (0, 3, 1, 2))


if __name__ == "__main__":
    key = jax.random.PRNGKey(0)
    kx, kg, kb = jax.random.split(key, 3)

    N, C, H, W = 1, 128, 7, 7  # shape implied by the module (x352)
    x = jax.random.normal(kx, (N, C, H, W), dtype=jnp.float32)

    # nn.BatchNorm2d defaults are gamma=1, beta=0; use non-trivial values so
    # the folded scale/shift path is actually exercised.
    gamma = 1.0 + 0.1 * jax.random.normal(kg, (C,), dtype=jnp.float32)
    beta = 0.1 * jax.random.normal(kb, (C,), dtype=jnp.float32)

    # Pure-JAX reference: training-mode BN (biased batch variance) + ReLU.
    mean = jnp.mean(x, axis=(0, 2, 3), keepdims=True)
    var = jnp.mean((x - mean) ** 2, axis=(0, 2, 3), keepdims=True)
    ref = jnp.maximum(
        (x - mean) * jax.lax.rsqrt(var + _EPS) * gamma.reshape(1, C, 1, 1)
        + beta.reshape(1, C, 1, 1),
        0.0,
    )

    # NCHW path (the module's layout): single device op (reshape/pallas/reshape
    # all fused inside one jit region).
    fwd_nchw = jax.jit(batchnorm_relu)
    out = jax.block_until_ready(fwd_nchw(x, gamma, beta))
    assert out.shape == (N, C, H, W)
    assert jnp.allclose(out, ref, atol=1e-5, rtol=1e-5)

    # Lane-dense NHWC path (preferred for NHWC-native callers).
    fwd_nhwc = jax.jit(batchnorm_relu_nhwc)
    out_nhwc = jax.block_until_ready(
        fwd_nhwc(jnp.transpose(x, (0, 2, 3, 1)), gamma, beta)
    )
    assert jnp.allclose(jnp.transpose(out_nhwc, (0, 3, 1, 2)), ref,
                        atol=1e-5, rtol=1e-5)

    print("KERNEL_OK")
</pallas_src>

<mosaic_0001>
module attributes {stable_mosaic.version = 11 : i64} {
  func.func @_bn_relu_cmajor_kernel(%arg0: memref<128x49xf32, #tpu.memory_space<vmem>>, %arg1: memref<128x2xf32, #tpu.memory_space<vmem>>, %arg2: memref<128x49xf32, #tpu.memory_space<vmem>>) attributes {dimension_semantics = [], scalar_prefetch = 0 : i64, scratch_operands = 0 : i64, tpu.core_type = #tpu.core_type<tc>} {
    %c0 = arith.constant 0 : index
    %c0_0 = arith.constant 0 : index
    %0 = vector.load %arg0[%c0, %c0_0] : memref<128x49xf32, #tpu.memory_space<vmem>>, vector<128x49xf32>
    %cst = arith.constant dense<0.000000e+00> : vector<128xf32>
    %1 = vector.multi_reduction <add>, %0, %cst [1] : vector<128x49xf32> to vector<128xf32>
    %2 = vector.shape_cast %1 : vector<128xf32> to vector<128x1xf32>
    %3 = arith.mulf %0, %0 : vector<128x49xf32>
    %cst_1 = arith.constant dense<0.000000e+00> : vector<128xf32>
    %4 = vector.multi_reduction <add>, %3, %cst_1 [1] : vector<128x49xf32> to vector<128xf32>
    %5 = vector.shape_cast %4 : vector<128xf32> to vector<128x1xf32>
    %cst_2 = arith.constant 0.0204081628 : f32
    %6 = vector.broadcast %cst_2 : f32 to vector<128x1xf32>
    %7 = arith.mulf %2, %6 : vector<128x1xf32>
    %cst_3 = arith.constant 0.0204081628 : f32
    %8 = vector.broadcast %cst_3 : f32 to vector<128x1xf32>
    %9 = arith.mulf %5, %8 : vector<128x1xf32>
    %10 = arith.mulf %7, %7 : vector<128x1xf32>
    %11 = arith.subf %9, %10 : vector<128x1xf32>
    %cst_4 = arith.constant 0.000000e+00 : f32
    %12 = vector.broadcast %cst_4 : f32 to vector<128x1xf32>
    %13 = arith.maximumf %11, %12 : vector<128x1xf32>
    %cst_5 = arith.constant 9.99999974E-6 : f32
    %14 = vector.broadcast %cst_5 : f32 to vector<128x1xf32>
    %15 = arith.addf %13, %14 : vector<128x1xf32>
    %16 = math.rsqrt %15 : vector<128x1xf32>
    %c0_6 = arith.constant 0 : index
    %c0_7 = arith.constant 0 : index
    %17 = vector.load %arg1[%c0_6, %c0_7] : memref<128x2xf32, #tpu.memory_space<vmem>>, vector<128x1xf32>
    %18 = arith.mulf %16, %17 : vector<128x1xf32>
    %c0_8 = arith.constant 0 : index
    %c1 = arith.constant 1 : index
    %19 = vector.load %arg1[%c0_8, %c1] : memref<128x2xf32, #tpu.memory_space<vmem>>, vector<128x1xf32>
    %20 = arith.mulf %7, %18 : vector<128x1xf32>
    %21 = arith.subf %19, %20 : vector<128x1xf32>
    %22 = vector.broadcast %18 : vector<128x1xf32> to vector<128x49xf32>
    %23 = arith.mulf %0, %22 : vector<128x49xf32>
    %24 = vector.broadcast %21 : vector<128x1xf32> to vector<128x49xf32>
    %25 = arith.addf %23, %24 : vector<128x49xf32>
    %cst_9 = arith.constant 0.000000e+00 : f32
    %26 = vector.broadcast %cst_9 : f32 to vector<128x49xf32>
    %27 = arith.maximumf %25, %26 : vector<128x49xf32>
    %c0_10 = arith.constant 0 : index
    %c0_11 = arith.constant 0 : index
    %28 = vector.load %arg2[%c0_10, %c0_11] : memref<128x49xf32, #tpu.memory_space<vmem>>, vector<128x49xf32>
    tpu.vector_store %arg2[%c0_10, %c0_11], %27 {strides = array<i32>} : memref<128x49xf32, #tpu.memory_space<vmem>>, vector<128x49xf32>,
    return
  }
}

</mosaic_0001>

<llo_original>
// kernel: batchnorm_relu.1
$region0: #{batchnorm_relu.1}
  #allocation0 [shape = 'u32[]', space=smem, size = 0x4, offset = 0x4, fixed_abs, tag = 'smem constant byte address 0x4 - core index']
  #allocation1 [shape = 'u32[144,128]{1,0:T(1,128)}', space=vmem, size = 0x12000, scoped, tag = 'internal scratch']
  %s0 = inlined_call_operand.vmem [shape: f32[128,49], index: 0, kind: input, shape index: {}]
  %s1 = inlined_call_operand.vmem [shape: f32[128,2], index: 1, kind: input, shape index: {}]
  %s2 = inlined_call_operand.vmem [shape: f32[128,49], index: 2, kind: output, shape index: {}]
  %s3 = sld [smem:[#allocation0]]
  $region18: #{batchnorm_relu.1} parent=0
    _
  %s5 = ssub.s32 1, %s3
  %s6 = scalar_select 0, %s5, %s3
  // Predicated region
  $region2: #{batchnorm_relu.1} parent=0 // pred_check
    _
  $region3: #{batchnorm_relu.1} parent=0 // pred_check_branch
    %8 = sbr.rel (0) target = $region5
  $region4: #{batchnorm_relu.1} parent=0 // pred_region
    _
  $region5: #{batchnorm_relu.1} parent=0 // pred_fallthru
    _
  // Predicated region
  $region6: #{batchnorm_relu.1} parent=0 // pred_check
    _
  $region7: #{batchnorm_relu.1} parent=0 // pred_check_branch
    %10 = sbr.rel (0) target = $region9
  $region8: #{batchnorm_relu.1} parent=0 // pred_region
    _
  $region9: #{batchnorm_relu.1} parent=0 // pred_fallthru
    _
  %v11 = vld [vmem:[%s0] sm:$0xff]
  %v12 = vld [vmem:[%s0 + $0x8] sm:$0xff]
  %v13 = vld [vmem:[%s0 + $0x10] sm:$0xff]
  %v14 = vld [vmem:[%s0 + $0x18] sm:$0xff]
  %v15 = vld [vmem:[%s0 + $0x20] sm:$0xff]
  %v16 = vld [vmem:[%s0 + $0x28] sm:$0xff]
  %v17 = vld [vmem:[%s0 + $0x30] sm:$0xff]
  %v18 = vld [vmem:[%s0 + $0x38] sm:$0xff]
  %v19 = vld [vmem:[%s0 + $0x40] sm:$0xff]
  %v20 = vld [vmem:[%s0 + $0x48] sm:$0xff]
  %v21 = vld [vmem:[%s0 + $0x50] sm:$0xff]
  %v22 = vld [vmem:[%s0 + $0x58] sm:$0xff]
  %v23 = vld [vmem:[%s0 + $0x60] sm:$0xff]
  %v24 = vld [vmem:[%s0 + $0x68] sm:$0xff]
  %v25 = vld [vmem:[%s0 + $0x70] sm:$0xff]
  %v26 = vld [vmem:[%s0 + $0x78] sm:$0xff]
  %vm27 = vcmask 400384
  %v28 = vsel %vm27, %v11, 0.0
  %29 = vadd.xlane.f32.xlu0 %v28
  %v30 = vpop.xlane.xlu0 %29
  %v31 = vsel %vm27, %v12, 0.0
  %32 = vadd.xlane.f32.xlu0 %v31
  %v33 = vpop.xlane.xlu0 %32
  %v34 = vsel %vm27, %v13, 0.0
  %35 = vadd.xlane.f32.xlu0 %v34
  %v36 = vpop.xlane.xlu0 %35
  %v37 = vsel %vm27, %v14, 0.0
  %38 = vadd.xlane.f32.xlu0 %v37
  %v39 = vpop.xlane.xlu0 %38
  %v40 = vsel %vm27, %v15, 0.0
  %41 = vadd.xlane.f32.xlu0 %v40
  %v42 = vpop.xlane.xlu0 %41
  %v43 = vsel %vm27, %v16, 0.0
  %44 = vadd.xlane.f32.xlu0 %v43
  %v45 = vpop.xlane.xlu0 %44
  %v46 = vsel %vm27, %v17, 0.0
  %47 = vadd.xlane.f32.xlu0 %v46
  %v48 = vpop.xlane.xlu0 %47
  %v49 = vsel %vm27, %v18, 0.0
  %50 = vadd.xlane.f32.xlu0 %v49
  %v51 = vpop.xlane.xlu0 %50
  %v52 = vsel %vm27, %v19, 0.0
  %53 = vadd.xlane.f32.xlu0 %v52
  %v54 = vpop.xlane.xlu0 %53
  %v55 = vsel %vm27, %v20, 0.0
  %56 = vadd.xlane.f32.xlu0 %v55
  %v57 = vpop.xlane.xlu0 %56
  %v58 = vsel %vm27, %v21, 0.0
  %59 = vadd.xlane.f32.xlu0 %v58
  %v60 = vpop.xlane.xlu0 %59
  %v61 = vsel %vm27, %v22, 0.0
  %62 = vadd.xlane.f32.xlu0 %v61
  %v63 = vpop.xlane.xlu0 %62
  %v64 = vsel %vm27, %v23, 0.0
  %65 = vadd.xlane.f32.xlu0 %v64
  %v66 = vpop.xlane.xlu0 %65
  %v67 = vsel %vm27, %v24, 0.0
  %68 = vadd.xlane.f32.xlu0 %v67
  %v69 = vpop.xlane.xlu0 %68
  %v70 = vsel %vm27, %v25, 0.0
  %71 = vadd.xlane.f32.xlu0 %v70
  %v72 = vpop.xlane.xlu0 %71
  %v73 = vsel %vm27, %v26, 0.0
  %74 = vadd.xlane.f32.xlu0 %v73
  %v75 = vpop.xlane.xlu0 %74
  %v76 = vmul.f32 %v11, %v11
  %v77 = vmul.f32 %v12, %v12
  %v78 = vmul.f32 %v13, %v13
  %v79 = vmul.f32 %v14, %v14
  %v80 = vmul.f32 %v15, %v15
  %v81 = vmul.f32 %v16, %v16
  %v82 = vmul.f32 %v17, %v17
  %v83 = vmul.f32 %v18, %v18
  %v84 = vmul.f32 %v19, %v19
  %v85 = vmul.f32 %v20, %v20
  %v86 = vmul.f32 %v21, %v21
  %v87 = vmul.f32 %v22, %v22
  %v88 = vmul.f32 %v23, %v23
  %v89 = vmul.f32 %v24, %v24
  %v90 = vmul.f32 %v25, %v25
  %v91 = vmul.f32 %v26, %v26
  %v92 = vsel %vm27, %v76, 0.0
  %93 = vadd.xlane.f32.xlu0 %v92
  %v94 = vpop.xlane.xlu0 %93
  %v95 = vsel %vm27, %v77, 0.0
  %96 = vadd.xlane.f32.xlu0 %v95
  %v97 = vpop.xlane.xlu0 %96
  %v98 = vsel %vm27, %v78, 0.0
  %99 = vadd.xlane.f32.xlu0 %v98
  %v100 = vpop.xlane.xlu0 %99
  %v101 = vsel %vm27, %v79, 0.0
  %102 = vadd.xlane.f32.xlu0 %v101
  %v103 = vpop.xlane.xlu0 %102
  %v104 = vsel %vm27, %v80, 0.0
  %105 = vadd.xlane.f32.xlu0 %v104
  %v106 = vpop.xlane.xlu0 %105
  %v107 = vsel %vm27, %v81, 0.0
  %108 = vadd.xlane.f32.xlu0 %v107
  %v109 = vpop.xlane.xlu0 %108
  %v110 = vsel %vm27, %v82, 0.0
  %111 = vadd.xlane.f32.xlu0 %v110
  %v112 = vpop.xlane.xlu0 %111
  %v113 = vsel %vm27, %v83, 0.0
  %114 = vadd.xlane.f32.xlu0 %v113
  %v115 = vpop.xlane.xlu0 %114
  %v116 = vsel %vm27, %v84, 0.0
  %117 = vadd.xlane.f32.xlu0 %v116
  %v118 = vpop.xlane.xlu0 %117
  %v119 = vsel %vm27, %v85, 0.0
  %120 = vadd.xlane.f32.xlu0 %v119
  %v121 = vpop.xlane.xlu0 %120
  %v122 = vsel %vm27, %v86, 0.0
  %123 = vadd.xlane.f32.xlu0 %v122
  %v124 = vpop.xlane.xlu0 %123
  %v125 = vsel %vm27, %v87, 0.0
  %126 = vadd.xlane.f32.xlu0 %v125
  %v127 = vpop.xlane.xlu0 %126
  %v128 = vsel %vm27, %v88, 0.0
  %129 = vadd.xlane.f32.xlu0 %v128
  %v130 = vpop.xlane.xlu0 %129
  %v131 = vsel %vm27, %v89, 0.0
  %132 = vadd.xlane.f32.xlu0 %v131
  %v133 = vpop.xlane.xlu0 %132
  %v134 = vsel %vm27, %v90, 0.0
  %135 = vadd.xlane.f32.xlu0 %v134
  %v136 = vpop.xlane.xlu0 %135
  %v137 = vsel %vm27, %v91, 0.0
  %138 = vadd.xlane.f32.xlu0 %v137
  %v139 = vpop.xlane.xlu0 %138
  %v140 = vmul.f32 %v30, 0.020408163
  %v141 = vmul.f32 %v33, 0.020408163
  %v142 = vmul.f32 %v36, 0.020408163
  %v143 = vmul.f32 %v39, 0.020408163
  %v144 = vmul.f32 %v42, 0.020408163
  %v145 = vmul.f32 %v45, 0.020408163
  %v146 = vmul.f32 %v48, 0.020408163
  %v147 = vmul.f32 %v51, 0.020408163
  %v148 = vmul.f32 %v54, 0.020408163
  %v149 = vmul.f32 %v57, 0.020408163
  %v150 = vmul.f32 %v60, 0.020408163
  %v151 = vmul.f32 %v63, 0.020408163
  %v152 = vmul.f32 %v66, 0.020408163
  %v153 = vmul.f32 %v69, 0.020408163
  %v154 = vmul.f32 %v72, 0.020408163
  %v155 = vmul.f32 %v75, 0.020408163
  %v156 = vmul.f32 %v94, 0.020408163
  %v157 = vmul.f32 %v97, 0.020408163
  %v158 = vmul.f32 %v100, 0.020408163
  %v159 = vmul.f32 %v103, 0.020408163
  %v160 = vmul.f32 %v106, 0.020408163
  %v161 = vmul.f32 %v109, 0.020408163
  %v162 = vmul.f32 %v112, 0.020408163
  %v163 = vmul.f32 %v115, 0.020408163
  %v164 = vmul.f32 %v118, 0.020408163
  %v165 = vmul.f32 %v121, 0.020408163
  %v166 = vmul.f32 %v124, 0.020408163
  %v167 = vmul.f32 %v127, 0.020408163
  %v168 = vmul.f32 %v130, 0.020408163
  %v169 = vmul.f32 %v133, 0.020408163
  %v170 = vmul.f32 %v136, 0.020408163
  %v171 = vmul.f32 %v139, 0.020408163
  %v172 = vmul.f32 %v140, %v140
  %v173 = vmul.f32 %v141, %v141
  %v174 = vmul.f32 %v142, %v142
  %v175 = vmul.f32 %v143, %v143
  %v176 = vmul.f32 %v144, %v144
  %v177 = vmul.f32 %v145, %v145
  %v178 = vmul.f32 %v146, %v146
  %v179 = vmul.f32 %v147, %v147
  %v180 = vmul.f32 %v148, %v148
  %v181 = vmul.f32 %v149, %v149
  %v182 = vmul.f32 %v150, %v150
  %v183 = vmul.f32 %v151, %v151
  %v184 = vmul.f32 %v152, %v152
  %v185 = vmul.f32 %v153, %v153
  %v186 = vmul.f32 %v154, %v154
  %v187 = vmul.f32 %v155, %v155
  %v188 = vsub.f32 %v156, %v172
  %v189 = vsub.f32 %v157, %v173
  %v190 = vsub.f32 %v158, %v174
  %v191 = vsub.f32 %v159, %v175
  %v192 = vsub.f32 %v160, %v176
  %v193 = vsub.f32 %v161, %v177
  %v194 = vsub.f32 %v162, %v178
  %v195 = vsub.f32 %v163, %v179
  %v196 = vsub.f32 %v164, %v180
  %v197 = vsub.f32 %v165, %v181
  %v198 = vsub.f32 %v166, %v182
  %v199 = vsub.f32 %v167, %v183
  %v200 = vsub.f32 %v168, %v184
  %v201 = vsub.f32 %v169, %v185
  %v202 = vsub.f32 %v170, %v186
  %v203 = vsub.f32 %v171, %v187
  %v204 = vmax.f32 %v188, 0.0
  %v205 = vmax.f32 %v189, 0.0
  %v206 = vmax.f32 %v190, 0.0
  %v207 = vmax.f32 %v191, 0.0
  %v208 = vmax.f32 %v192, 0.0
  %v209 = vmax.f32 %v193, 0.0
  %v210 = vmax.f32 %v194, 0.0
  %v211 = vmax.f32 %v195, 0.0
  %v212 = vmax.f32 %v196, 0.0
  %v213 = vmax.f32 %v197, 0.0
  %v214 = vmax.f32 %v198, 0.0
  %v215 = vmax.f32 %v199, 0.0
  %v216 = vmax.f32 %v200, 0.0
  %v217 = vmax.f32 %v201, 0.0
  %v218 = vmax.f32 %v202, 0.0
  %v219 = vmax.f32 %v203, 0.0
  %v220 = vadd.f32 %v204, 1e-05
  %v221 = vadd.f32 %v205, 1e-05
  %v222 = vadd.f32 %v206, 1e-05
  %v223 = vadd.f32 %v207, 1e-05
  %v224 = vadd.f32 %v208, 1e-05
  %v225 = vadd.f32 %v209, 1e-05
  %v226 = vadd.f32 %v210, 1e-05
  %v227 = vadd.f32 %v211, 1e-05
  %v228 = vadd.f32 %v212, 1e-05
  %v229 = vadd.f32 %v213, 1e-05
  %v230 = vadd.f32 %v214, 1e-05
  %v231 = vadd.f32 %v215, 1e-05
  %v232 = vadd.f32 %v216, 1e-05
  %v233 = vadd.f32 %v217, 1e-05
  %v234 = vadd.f32 %v218, 1e-05
  %v235 = vadd.f32 %v219, 1e-05
  %v236 = vrsqrt.pop %v220
  %v237 = vrsqrt.pop %v221
  %v238 = vrsqrt.pop %v222
  %v239 = vrsqrt.pop %v223
  %v240 = vrsqrt.pop %v224
  %v241 = vrsqrt.pop %v225
  %v242 = vrsqrt.pop %v226
  %v243 = vrsqrt.pop %v227
  %v244 = vrsqrt.pop %v228
  %v245 = vrsqrt.pop %v229
  %v246 = vrsqrt.pop %v230
  %v247 = vrsqrt.pop %v231
  %v248 = vrsqrt.pop %v232
  %v249 = vrsqrt.pop %v233
  %v250 = vrsqrt.pop %v234
  %v251 = vrsqrt.pop %v235
  %v252 = vld [vmem:[%s1] sm:$0xff]
  %v253 = vld [vmem:[%s1 + $0x8] sm:$0xff]
  %v254 = vld [vmem:[%s1 + $0x10] sm:$0xff]
  %v255 = vld [vmem:[%s1 + $0x18] sm:$0xff]
  %v256 = vld [vmem:[%s1 + $0x20] sm:$0xff]
  %v257 = vld [vmem:[%s1 + $0x28] sm:$0xff]
  %v258 = vld [vmem:[%s1 + $0x30] sm:$0xff]
  %v259 = vld [vmem:[%s1 + $0x38] sm:$0xff]
  %v260 = vld [vmem:[%s1 + $0x40] sm:$0xff]
  %v261 = vld [vmem:[%s1 + $0x48] sm:$0xff]
  %v262 = vld [vmem:[%s1 + $0x50] sm:$0xff]
  %v263 = vld [vmem:[%s1 + $0x58] sm:$0xff]
  %v264 = vld [vmem:[%s1 + $0x60] sm:$0xff]
  %v265 = vld [vmem:[%s1 + $0x68] sm:$0xff]
  %v266 = vld [vmem:[%s1 + $0x70] sm:$0xff]
  %v267 = vld [vmem:[%s1 + $0x78] sm:$0xff]
  %v268 = vmul.f32 %v236, %v252
  %v269 = vmul.f32 %v237, %v253
  %v270 = vmul.f32 %v238, %v254
  %v271 = vmul.f32 %v239, %v255
  %v272 = vmul.f32 %v240, %v256
  %v273 = vmul.f32 %v241, %v257
  %v274 = vmul.f32 %v242, %v258
  %v275 = vmul.f32 %v243, %v259
  %v276 = vmul.f32 %v244, %v260
  %v277 = vmul.f32 %v245, %v261
  %v278 = vmul.f32 %v246, %v262
  %v279 = vmul.f32 %v247, %v263
  %v280 = vmul.f32 %v248, %v264
  %v281 = vmul.f32 %v249, %v265
  %v282 = vmul.f32 %v250, %v266
  %v283 = vmul.f32 %v251, %v267
  %v284 = vmul.f32 %v140, %v268
  %v285 = vmul.f32 %v141, %v269
  %v286 = vmul.f32 %v142, %v270
  %v287 = vmul.f32 %v143, %v271
  %v288 = vmul.f32 %v144, %v272
  %v289 = vmul.f32 %v145, %v273
  %v290 = vmul.f32 %v146, %v274
  %v291 = vmul.f32 %v147, %v275
  %v292 = vmul.f32 %v148, %v276
  %v293 = vmul.f32 %v149, %v277
  %v294 = vmul.f32 %v150, %v278
  %v295 = vmul.f32 %v151, %v279
  %v296 = vmul.f32 %v152, %v280
  %v297 = vmul.f32 %v153, %v281
  %v298 = vmul.f32 %v154, %v282
  %v299 = vmul.f32 %v155, %v283
  %316 = vrot.lane.b32.xlu0 %v284, 1
  %v317 = vpop.permute.xlu0 %316
  %318 = vrot.lane.b32.xlu0 %v285, 1
  %v319 = vpop.permute.xlu0 %318
  %320 = vrot.lane.b32.xlu0 %v286, 1
  %v321 = vpop.permute.xlu0 %320
  %322 = vrot.lane.b32.xlu0 %v287, 1
  %v323 = vpop.permute.xlu0 %322
  %324 = vrot.lane.b32.xlu0 %v288, 1
  %v325 = vpop.permute.xlu0 %324
  %326 = vrot.lane.b32.xlu0 %v289, 1
  %v327 = vpop.permute.xlu0 %326
  %328 = vrot.lane.b32.xlu0 %v290, 1
  %v329 = vpop.permute.xlu0 %328
  %330 = vrot.lane.b32.xlu0 %v291, 1
  %v331 = vpop.permute.xlu0 %330
  %332 = vrot.lane.b32.xlu0 %v292, 1
  %v333 = vpop.permute.xlu0 %332
  %334 = vrot.lane.b32.xlu0 %v293, 1
  %v335 = vpop.permute.xlu0 %334
  %336 = vrot.lane.b32.xlu0 %v294, 1
  %v337 = vpop.permute.xlu0 %336
  %338 = vrot.lane.b32.xlu0 %v295, 1
  %v339 = vpop.permute.xlu0 %338
  %340 = vrot.lane.b32.xlu0 %v296, 1
  %v341 = vpop.permute.xlu0 %340
  %342 = vrot.lane.b32.xlu0 %v297, 1
  %v343 = vpop.permute.xlu0 %342
  %344 = vrot.lane.b32.xlu0 %v298, 1
  %v345 = vpop.permute.xlu0 %344
  %346 = vrot.lane.b32.xlu0 %v299, 1
  %v347 = vpop.permute.xlu0 %346
  %v364 = vsub.f32 %v252, %v317
  %v365 = vsub.f32 %v253, %v319
  %v366 = vsub.f32 %v254, %v321
  %v367 = vsub.f32 %v255, %v323
  %v368 = vsub.f32 %v256, %v325
  %v369 = vsub.f32 %v257, %v327
  %v370 = vsub.f32 %v258, %v329
  %v371 = vsub.f32 %v259, %v331
  %v372 = vsub.f32 %v260, %v333
  %v373 = vsub.f32 %v261, %v335
  %v374 = vsub.f32 %v262, %v337
  %v375 = vsub.f32 %v263, %v339
  %v376 = vsub.f32 %v264, %v341
  %v377 = vsub.f32 %v265, %v343
  %v378 = vsub.f32 %v266, %v345
  %v379 = vsub.f32 %v267, %v347
  %381 = vset.pattern.permute.xlu0 0
  %382 = vperm.xlu0 %381, %v268
  %v383 = vpop.permute.xlu0 %382
  %386 = vset.pattern.permute.xlu0 0
  %387 = vperm.xlu0 %386, %v269
  %v388 = vpop.permute.xlu0 %387
  %391 = vset.pattern.permute.xlu0 0
  %392 = vperm.xlu0 %391, %v270
  %v393 = vpop.permute.xlu0 %392
  %396 = vset.pattern.permute.xlu0 0
  %397 = vperm.xlu0 %396, %v271
  %v398 = vpop.permute.xlu0 %397
  %401 = vset.pattern.permute.xlu0 0
  %402 = vperm.xlu0 %401, %v272
  %v403 = vpop.permute.xlu0 %402
  %406 = vset.pattern.permute.xlu0 0
  %407 = vperm.xlu0 %406, %v273
  %v408 = vpop.permute.xlu0 %407
  %411 = vset.pattern.permute.xlu0 0
  %412 = vperm.xlu0 %411, %v274
  %v413 = vpop.permute.xlu0 %412
  %416 = vset.pattern.permute.xlu0 0
  %417 = vperm.xlu0 %416, %v275
  %v418 = vpop.permute.xlu0 %417
  %421 = vset.pattern.permute.xlu0 0
  %422 = vperm.xlu0 %421, %v276
  %v423 = vpop.permute.xlu0 %422
  %426 = vset.pattern.permute.xlu0 0
  %427 = vperm.xlu0 %426, %v277
  %v428 = vpop.permute.xlu0 %427
  %431 = vset.pattern.permute.xlu0 0
  %432 = vperm.xlu0 %431, %v278
  %v433 = vpop.permute.xlu0 %432
  %436 = vset.pattern.permute.xlu0 0
  %437 = vperm.xlu0 %436, %v279
  %v438 = vpop.permute.xlu0 %437
  %441 = vset.pattern.permute.xlu0 0
  %442 = vperm.xlu0 %441, %v280
  %v443 = vpop.permute.xlu0 %442
  %446 = vset.pattern.permute.xlu0 0
  %447 = vperm.xlu0 %446, %v281
  %v448 = vpop.permute.xlu0 %447
  %451 = vset.pattern.permute.xlu0 0
  %452 = vperm.xlu0 %451, %v282
  %v453 = vpop.permute.xlu0 %452
  %456 = vset.pattern.permute.xlu0 0
  %457 = vperm.xlu0 %456, %v283
  %v458 = vpop.permute.xlu0 %457
  %v460 = vmul.f32 %v11, %v383
  %v461 = vmul.f32 %v12, %v388
  %v462 = vmul.f32 %v13, %v393
  %v463 = vmul.f32 %v14, %v398
  %v464 = vmul.f32 %v15, %v403
  %v465 = vmul.f32 %v16, %v408
  %v466 = vmul.f32 %v17, %v413
  %v467 = vmul.f32 %v18, %v418
  %v468 = vmul.f32 %v19, %v423
  %v469 = vmul.f32 %v20, %v428
  %v470 = vmul.f32 %v21, %v433
  %v471 = vmul.f32 %v22, %v438
  %v472 = vmul.f32 %v23, %v443
  %v473 = vmul.f32 %v24, %v448
  %v474 = vmul.f32 %v25, %v453
  %v475 = vmul.f32 %v26, %v458
  %477 = vset.pattern.permute.xlu0 1
  %478 = vperm.xlu0 %477, %v364
  %v479 = vpop.permute.xlu0 %478
  %482 = vset.pattern.permute.xlu0 1
  %483 = vperm.xlu0 %482, %v365
  %v484 = vpop.permute.xlu0 %483
  %487 = vset.pattern.permute.xlu0 1
  %488 = vperm.xlu0 %487, %v366
  %v489 = vpop.permute.xlu0 %488
  %492 = vset.pattern.permute.xlu0 1
  %493 = vperm.xlu0 %492, %v367
  %v494 = vpop.permute.xlu0 %493
  %497 = vset.pattern.permute.xlu0 1
  %498 = vperm.xlu0 %497, %v368
  %v499 = vpop.permute.xlu0 %498
  %502 = vset.pattern.permute.xlu0 1
  %503 = vperm.xlu0 %502, %v369
  %v504 = vpop.permute.xlu0 %503
  %507 = vset.pattern.permute.xlu0 1
  %508 = vperm.xlu0 %507, %v370
  %v509 = vpop.permute.xlu0 %508
  %512 = vset.pattern.permute.xlu0 1
  %513 = vperm.xlu0 %512, %v371
  %v514 = vpop.permute.xlu0 %513
  %517 = vset.pattern.permute.xlu0 1
  %518 = vperm.xlu0 %517, %v372
  %v519 = vpop.permute.xlu0 %518
  %522 = vset.pattern.permute.xlu0 1
  %523 = vperm.xlu0 %522, %v373
  %v524 = vpop.permute.xlu0 %523
  %527 = vset.pattern.permute.xlu0 1
  %528 = vperm.xlu0 %527, %v374
  %v529 = vpop.permute.xlu0 %528
  %532 = vset.pattern.permute.xlu0 1
  %533 = vperm.xlu0 %532, %v375
  %v534 = vpop.permute.xlu0 %533
  %537 = vset.pattern.permute.xlu0 1
  %538 = vperm.xlu0 %537, %v376
  %v539 = vpop.permute.xlu0 %538
  %542 = vset.pattern.permute.xlu0 1
  %543 = vperm.xlu0 %542, %v377
  %v544 = vpop.permute.xlu0 %543
  %547 = vset.pattern.permute.xlu0 1
  %548 = vperm.xlu0 %547, %v378
  %v549 = vpop.permute.xlu0 %548
  %552 = vset.pattern.permute.xlu0 1
  %553 = vperm.xlu0 %552, %v379
  %v554 = vpop.permute.xlu0 %553
  %v556 = vadd.f32 %v460, %v479
  %v557 = vadd.f32 %v461, %v484
  %v558 = vadd.f32 %v462, %v489
  %v559 = vadd.f32 %v463, %v494
  %v560 = vadd.f32 %v464, %v499
  %v561 = vadd.f32 %v465, %v504
  %v562 = vadd.f32 %v466, %v509
  %v563 = vadd.f32 %v467, %v514
  %v564 = vadd.f32 %v468, %v519
  %v565 = vadd.f32 %v469, %v524
  %v566 = vadd.f32 %v470, %v529
  %v567 = vadd.f32 %v471, %v534
  %v568 = vadd.f32 %v472, %v539
  %v569 = vadd.f32 %v473, %v544
  %v570 = vadd.f32 %v474, %v549
  %v571 = vadd.f32 %v475, %v554
  %v572 = vmax.f32 %v556, 0.0
  %v573 = vmax.f32 %v557, 0.0
  %v574 = vmax.f32 %v558, 0.0
  %v575 = vmax.f32 %v559, 0.0
  %v576 = vmax.f32 %v560, 0.0
  %v577 = vmax.f32 %v561, 0.0
  %v578 = vmax.f32 %v562, 0.0
  %v579 = vmax.f32 %v563, 0.0
  %v580 = vmax.f32 %v564, 0.0
  %v581 = vmax.f32 %v565, 0.0
  %v582 = vmax.f32 %v566, 0.0
  %v583 = vmax.f32 %v567, 0.0
  %v584 = vmax.f32 %v568, 0.0
  %v585 = vmax.f32 %v569, 0.0
  %v586 = vmax.f32 %v570, 0.0
  %v587 = vmax.f32 %v571, 0.0
  %588 = vst.msk [vmem:[%s2] sm:$0xff] %vm27, %v572
  %589 = vst.msk [vmem:[%s2 + $0x8] sm:$0xff] %vm27, %v573
  %590 = vst.msk [vmem:[%s2 + $0x10] sm:$0xff] %vm27, %v574
  %591 = vst.msk [vmem:[%s2 + $0x18] sm:$0xff] %vm27, %v575
  %592 = vst.msk [vmem:[%s2 + $0x20] sm:$0xff] %vm27, %v576
  %593 = vst.msk [vmem:[%s2 + $0x28] sm:$0xff] %vm27, %v577
  %594 = vst.msk [vmem:[%s2 + $0x30] sm:$0xff] %vm27, %v578
  %595 = vst.msk [vmem:[%s2 + $0x38] sm:$0xff] %vm27, %v579
  %596 = vst.msk [vmem:[%s2 + $0x40] sm:$0xff] %vm27, %v580
  %597 = vst.msk [vmem:[%s2 + $0x48] sm:$0xff] %vm27, %v581
  %598 = vst.msk [vmem:[%s2 + $0x50] sm:$0xff] %vm27, %v582
  %599 = vst.msk [vmem:[%s2 + $0x58] sm:$0xff] %vm27, %v583
  %600 = vst.msk [vmem:[%s2 + $0x60] sm:$0xff] %vm27, %v584
  %601 = vst.msk [vmem:[%s2 + $0x68] sm:$0xff] %vm27, %v585
  %602 = vst.msk [vmem:[%s2 + $0x70] sm:$0xff] %vm27, %v586
  %603 = vst.msk [vmem:[%s2 + $0x78] sm:$0xff] %vm27, %v587
  // Predicated region
  $region10: #{batchnorm_relu.1} parent=0 // pred_check
    _
  $region11: #{batchnorm_relu.1} parent=0 // pred_check_branch
    %605 = sbr.rel (0) target = $region13
  $region12: #{batchnorm_relu.1} parent=0 // pred_region
    _
  $region13: #{batchnorm_relu.1} parent=0 // pred_fallthru
    _
  // Predicated region
  $region14: #{batchnorm_relu.1} parent=0 // pred_check
    _
  $region15: #{batchnorm_relu.1} parent=0 // pred_check_branch
    %607 = sbr.rel (0) target = $region17
  $region16: #{batchnorm_relu.1} parent=0 // pred_region
    _
  $region17: #{batchnorm_relu.1} parent=0 // pred_fallthru
    _

</llo_original>
